<compile_context>
chip_gen: v6e
topology: v6e:2x2x1
jax: 0.10.0
libtpu: 0.0.40
codegen_flags: <defaults>
</compile_context>

<pallas_src>
import jax
import jax.numpy as jnp
from jax.experimental import pallas as pl
from jax.experimental.pallas import tpu as pltpu

_LANES = 128
# 4096 rows * 128 lanes * 4 B = 2 MiB f32 input tile (+0.5 MiB bool output);
# double-buffered in+out ~= 5 MiB -> fits scoped VMEM on every generation
# while amortizing the ~0.35 us per-grid-step overhead.
_MAX_TILE_ROWS = 4096
_MIN_GRID_STEPS = 4  # >= 2 steps per TensorCore on v7x's 2-TC chips


def _round_up(x, m):
    return ((x + m - 1) // m) * m


def _gt_zero_kernel(x_ref, o_ref):
    # Elementwise compare on the VPU; the mask vreg is stored directly as a
    # bool tile (no extra cast pass).  NaN > 0 == False matches torch.gt.
    o_ref[...] = x_ref[...] > 0.0


def post_process(x):
    """Pallas equivalent of PostProcess.forward: torch.gt(x, 0.0) -> bool tensor."""
    # TODO(synk): for activation-sized inputs the real win is fusing this
    # compare into the producer kernel's epilogue (or letting XLA fuse a plain
    # `x > 0.0`); a standalone custom call costs dispatch + an extra HBM
    # round-trip.  Kept standalone here per the module spec.
    orig_shape = x.shape
    total = x.size

    flat = x.reshape(-1)
    # Pad only to the 128-lane boundary (never to a full tile).
    lane_pad = (-total) % _LANES
    if lane_pad:
        flat = jnp.pad(flat, (0, lane_pad))
    rows = flat.size // _LANES
    x2d = flat.reshape(rows, _LANES)

    if rows <= _MAX_TILE_ROWS:
        # Single block equal to the full array extent: exempt from the
        # (8/32, 128) divisibility constraint and no grid-step overhead.
        tile_rows = rows
    else:
        # Keep >= _MIN_GRID_STEPS steps (both v7x TCs busy), 32-row aligned so
        # the packed bool output stores are unmasked, capped at _MAX_TILE_ROWS
        # so double-buffered tiles fit scoped VMEM on all generations.
        tile_rows = min(_MAX_TILE_ROWS,
                        _round_up(pl.cdiv(rows, _MIN_GRID_STEPS), 32))
    grid = (pl.cdiv(rows, tile_rows),)

    in_tile_bytes = tile_rows * _LANES * x.dtype.itemsize
    out_tile_bytes = tile_rows * _LANES  # bool = 1 byte/elem
    vmem_limit = min(128 << 20, 2 * (in_tile_bytes + out_tile_bytes) + (8 << 20))

    out2d = pl.pallas_call(
        _gt_zero_kernel,
        out_shape=jax.ShapeDtypeStruct((rows, _LANES), jnp.bool_),
        grid=grid,
        in_specs=[pl.BlockSpec((tile_rows, _LANES), lambda i: (i, 0))],
        out_specs=pl.BlockSpec((tile_rows, _LANES), lambda i: (i, 0)),
        compiler_params=pltpu.CompilerParams(
            dimension_semantics=("parallel",),
            vmem_limit_bytes=vmem_limit,
        ),
    )(x2d)

    out_flat = out2d.reshape(-1)
    if lane_pad:
        out_flat = out_flat[:total]
    return out_flat.reshape(orig_shape)


if __name__ == "__main__":
    key = jax.random.PRNGKey(0)
    x = jax.random.normal(key, (2, 4, 16, 16), dtype=jnp.float32)

    y = post_process(x)
    jax.block_until_ready(y)

    # Sanity check against plain JAX reference.
    ref = x > 0.0
    assert y.dtype == jnp.bool_
    assert y.shape == x.shape
    assert bool(jnp.all(y == ref))

    print("KERNEL_OK")
</pallas_src>

<mosaic_0001>
module attributes {stable_mosaic.version = 11 : i64} {
  func.func @_gt_zero_kernel(%arg0: i32, %arg1: memref<16x128xf32, #tpu.memory_space<vmem>>, %arg2: memref<16x128xi32, #tpu.memory_space<vmem>>) attributes {dimension_semantics = [#tpu.dimension_semantics<parallel>], iteration_bounds = array<i64: 1>, scalar_prefetch = 0 : i64, scratch_operands = 0 : i64, tpu.core_type = #tpu.core_type<tc>, window_params = [{transform_indices = @transform_0, window_bounds = array<i64: 16, 128>}, {transform_indices = @transform_1, window_bounds = array<i64: 16, 128>}]} {
    %c0 = arith.constant 0 : index
    %c0_0 = arith.constant 0 : index
    %0 = vector.load %arg1[%c0, %c0_0] : memref<16x128xf32, #tpu.memory_space<vmem>>, vector<16x128xf32>
    %cst = arith.constant 0.000000e+00 : f32
    %1 = vector.broadcast %cst : f32 to vector<16x128xf32>
    %2 = arith.cmpf ogt, %0, %1 : vector<16x128xf32>
    %c0_1 = arith.constant 0 : index
    %c0_2 = arith.constant 0 : index
    %3 = vector.load %arg2[%c0_1, %c0_2] : memref<16x128xi32, #tpu.memory_space<vmem>>, vector<16x128xi32>
    %4 = arith.extui %2 : vector<16x128xi1> to vector<16x128xi32>
    %cst_3 = arith.constant dense<0> : vector<16x128xi32>
    %5 = arith.cmpi ne, %3, %cst_3 : vector<16x128xi32>
    tpu.vector_store %arg2[%c0_1, %c0_2], %4 {strides = array<i32>} : memref<16x128xi32, #tpu.memory_space<vmem>>, vector<16x128xi32>,
    return
  }
  func.func @transform_0(%arg0: i32) -> (i32, i32) {
    %c0_i32 = arith.constant 0 : i32
    %c0_i32_0 = arith.constant 0 : i32
    return %arg0, %c0_i32 : i32, i32
  }
  func.func @transform_1(%arg0: i32) -> (i32, i32) {
    %c0_i32 = arith.constant 0 : i32
    %c0_i32_0 = arith.constant 0 : i32
    return %arg0, %c0_i32 : i32, i32
  }
}

</mosaic_0001>

<llo_original>
// kernel: tpu_custom_call.1
$region0: #{tpu_custom_call.1}
  #allocation0 [shape = 'u32[]', space=smem, size = 0x4, offset = 0x4, fixed_abs, tag = 'smem constant byte address 0x4 - core index']
  #allocation1 [shape = 'u32[144,128]{1,0:T(1,128)}', space=vmem, size = 0x12000, scoped, tag = 'internal scratch']
  %s0 = inlined_call_operand.hbm [shape: f32[16,128], index: 0, kind: input, shape index: {}]
  %s1 = inlined_call_operand.vmem [shape: s32[16,128], index: 1, kind: output, shape index: {}]
  %s2 = sld [smem:[#allocation0]]
  $region18: #{tpu_custom_call.1} parent=0
    _
  %s4 = ssub.s32 1, %s2
  %s5 = scalar_select 0, %s4, %s2
  $region1: #{tpu_custom_call.1} parent=0
    #allocation2 [shape = 'u8[8192]{0}', space=vmem, size = 0x2000, scoped, tag = 'input window, operand 0, single buffered']
    #allocation3 [shape = 's32[1]{0}', space=sflag, size = 0x4, scoped, tag = 'scoped memory for tpu_custom_call.1']
    %6 = vsyncpa [#allocation3], 0
    // Predicated region
    $region2: #{tpu_custom_call.1} parent=1 // pred_check
      _
    $region3: #{tpu_custom_call.1} parent=1 // pred_check_branch
      %8 = sbr.rel (0) target = $region5
    $region4: #{tpu_custom_call.1} parent=1 // pred_region
      %s10 = ssub.s32 256, 256
      %11 = vsyncadd [#allocation3], %s10
      %s12 = sshll.u32 [#allocation2], 4
      %s13 = int_to_ptr.vmem [resolvable:$true] %s12
      %18 = dma.hbm_to_vmem [thread:$0]  %s0, 256, %s13, [#allocation3], 128, 128, 8
    $region5: #{tpu_custom_call.1} parent=1 // pred_fallthru
      _
    // Predicated region
    $region6: #{tpu_custom_call.1} parent=1 // pred_check
      _
    $region7: #{tpu_custom_call.1} parent=1 // pred_check_branch
      %20 = sbr.rel (0) target = $region9
    $region8: #{tpu_custom_call.1} parent=1 // pred_region
      %21 = dma.done [#allocation3], 256
    $region9: #{tpu_custom_call.1} parent=1 // pred_fallthru
      _
    %v22 = vld [vmem:[#allocation2] sm:$0xff]
    %v23 = vld [vmem:[#allocation2 + $0x8] sm:$0xff]
    %vm24 = vcmp.gt.f32.partialorder %v22, 0.0
    %vm25 = vcmp.gt.f32.partialorder %v23, 0.0
    %v26 = vsel %vm24, 1, 0
    %v27 = vsel %vm25, 1, 0
    %28 = vst [vmem:[%s1] sm:$0xff] %v26
    %29 = vst [vmem:[%s1 + $0x8] sm:$0xff] %v27
    // Predicated region
    $region10: #{tpu_custom_call.1} parent=1 // pred_check
      _
    $region11: #{tpu_custom_call.1} parent=1 // pred_check_branch
      %31 = sbr.rel (0) target = $region13
    $region12: #{tpu_custom_call.1} parent=1 // pred_region
      _
    $region13: #{tpu_custom_call.1} parent=1 // pred_fallthru
      _
    // Predicated region
    $region14: #{tpu_custom_call.1} parent=1 // pred_check
      _
    $region15: #{tpu_custom_call.1} parent=1 // pred_check_branch
      %33 = sbr.rel (0) target = $region17
    $region16: #{tpu_custom_call.1} parent=1 // pred_region
      _
    $region17: #{tpu_custom_call.1} parent=1 // pred_fallthru
      _
    %34 = vsyncpa [#allocation3], 1

</llo_original>
